<compile_context>
chip_gen: v7x
topology: tpu7x:2x2x1
jax: 0.10.0
libtpu: 0.0.40
codegen_flags: <defaults>
</compile_context>

<pallas_src>
import functools

import jax
import jax.numpy as jnp
from jax.experimental import pallas as pl
from jax.experimental.pallas import tpu as pltpu  # noqa: F401  (TPU backend)

_EPS = 1e-5
_PAD = 128   # lane-dense feature padding


def _full_spec(shape):
    # Single full-extent block (covers the whole array, so the (8,128) tiling
    # rule does not trigger); the grid is empty (one invocation).
    return pl.BlockSpec(shape, lambda: tuple(0 for _ in shape))


def _make_fused_forward_kernel(n_layers, d_in0):
    """Kernel computing the whole MLP forward pass in VMEM.

    Ref layout: (x, w_slab, p_slab, out)
      x      : (N, d_in0)        activations (unpadded input width)
      w_slab : (L, 128, 128)     pre-transposed weights, zero-padded
      p_slab : (L, 3, 128)       rows = [bias, gamma, beta], zero-padded lanes
      out    : (N, 128)          lane-dense padded output
    """

    def kernel(x_ref, w_ref, p_ref, o_ref):
        x = x_ref[...]
        n = x.shape[0]
        inv_n = 1.0 / float(n)          # compile-time constant, no f32 divide

        for i in range(n_layers):
            # Layer 0 input is unpadded (N, d_in0): slice the real Din rows
            # (static, sublane-aligned).  Later layers use the full padded
            # (128, 128) weight: activation pad lanes and weight pad rows are
            # both exact zeros, so no slice is needed.
            w = w_ref[0, :d_in0, :] if i == 0 else w_ref[i]

            p = p_ref[i]                 # one load of the (3, 128) param slab
            bias = p[0:1, :]             # (1, 128)

            # Linear: MXU matmul with f32 accumulation + bias broadcast.
            y = jnp.dot(x, w, preferred_element_type=jnp.float32) + bias

            if i < n_layers - 1:
                gamma = p[1:2, :]        # (1, 128), zero in pad lanes
                beta = p[2:3, :]         # (1, 128), zero in pad lanes

                y = jnp.maximum(y, 0.0)  # ReLU

                # One-pass batch statistics (biased variance), folded into a
                # per-feature scale/shift so the (N, 128) tile only sees one
                # mul + one add in the epilogue.  Clamp var >= 0 to guard
                # against cancellation before rsqrt.
                mean = jnp.sum(y, axis=0, keepdims=True) * inv_n
                ex2 = jnp.sum(y * y, axis=0, keepdims=True) * inv_n
                var = jnp.maximum(ex2 - mean * mean, 0.0)
                inv_std = jax.lax.rsqrt(var + _EPS)
                scale = gamma * inv_std
                shift = beta - mean * scale
                y = y * scale + shift    # pad lanes -> exact 0 (gamma=beta=0)

            x = y

        o_ref[...] = x.astype(o_ref.dtype)   # lane-dense (N, 128) store

    return kernel


def wsc_forward_pallas(x, w_slab, p_slab, d_out):
    """Fused forward pass on packed parameter slabs. Returns (N, d_out)."""
    n, d_in0 = x.shape
    n_layers, _, pad = w_slab.shape

    out_padded = pl.pallas_call(
        _make_fused_forward_kernel(n_layers, d_in0),
        out_shape=jax.ShapeDtypeStruct((n, pad), jnp.float32),
        grid=(),
        in_specs=[_full_spec(x.shape),
                  _full_spec(w_slab.shape),
                  _full_spec(p_slab.shape)],
        out_specs=_full_spec((n, pad)),
    )(x, w_slab, p_slab)

    # Slice the real output columns outside the kernel (pad lanes are zero).
    return out_padded[:, :d_out]


@functools.partial(jax.jit, static_argnames=("d_out",))
def wsc_1det_struct_forward(x, w_slab, p_slab, *, d_out):
    return wsc_forward_pallas(x, w_slab, p_slab, d_out)


def init_raw_params(key, encoder_struct):
    """Deterministic init mirroring the PyTorch __init__ (original layout).

      weight[i]: (struct[i+1], struct[i]) kaiming_normal_ (fan_in, relu)
      bias[i]:   (struct[i+1],) uniform in +-1/sqrt(fan_in)
      BatchNorm gamma=1, beta=0.
    """
    params = []
    dep = len(encoder_struct)
    for i in range(dep - 1):
        fan_in = encoder_struct[i]
        fan_out = encoder_struct[i + 1]
        key, kw, kb = jax.random.split(key, 3)
        std = (2.0 / fan_in) ** 0.5
        w = std * jax.random.normal(kw, (fan_out, fan_in), dtype=jnp.float32)
        bound = 1.0 / (fan_in ** 0.5)
        b = jax.random.uniform(kb, (fan_out,), minval=-bound, maxval=bound,
                               dtype=jnp.float32)
        gamma = jnp.ones((fan_out,), dtype=jnp.float32)
        beta = jnp.zeros((fan_out,), dtype=jnp.float32)
        params.append((w, b, gamma, beta))
    return params


def pack_params(raw_params, pad=_PAD):
    """One-time packing into the kernel layout.

    Returns:
      w_slab: (L, pad, pad) pre-transposed weights, zero-padded in Din/Dout.
      p_slab: (L, 3, pad)   rows = [bias, gamma, beta], zero in pad lanes
              (so the BN epilogue writes exact zeros there).
    """
    w_blocks, p_blocks = [], []
    for (w, b, gamma, beta) in raw_params:
        d_out, d_in = w.shape
        wt = jnp.zeros((pad, pad), jnp.float32).at[:d_in, :d_out].set(w.T)
        p = jnp.zeros((3, pad), jnp.float32)
        p = p.at[0, :d_out].set(b)
        p = p.at[1, :d_out].set(gamma)
        p = p.at[2, :d_out].set(beta)
        w_blocks.append(wt)
        p_blocks.append(p)
    return jnp.stack(w_blocks), jnp.stack(p_blocks)


def reference_forward(x, raw_params):
    """Pure-JAX reference with PyTorch training-mode BatchNorm1d semantics
    (two-pass biased variance), for correctness checking."""
    n_layers = len(raw_params)
    for i, (w, b, gamma, beta) in enumerate(raw_params):
        x = x @ w.T + b
        if i < n_layers - 1:
            x = jnp.maximum(x, 0.0)
            mean = jnp.mean(x, axis=0, keepdims=True)
            var = jnp.mean((x - mean) ** 2, axis=0, keepdims=True)
            x = gamma * (x - mean) / jnp.sqrt(var + _EPS) + beta
    return x


if __name__ == "__main__":
    encoder_struct = [32, 64, 48, 16]   # dep = 4 -> 3 Linear layers, 2 BN
    batch = 8

    key = jax.random.PRNGKey(0)
    key, kx = jax.random.split(key)
    x = jax.random.normal(kx, (batch, encoder_struct[0]), dtype=jnp.float32)

    raw_params = init_raw_params(key, encoder_struct)
    w_slab, p_slab = pack_params(raw_params)

    out = wsc_1det_struct_forward(x, w_slab, p_slab, d_out=encoder_struct[-1])
    out = jax.block_until_ready(out)

    ref = reference_forward(x, raw_params)
    assert out.shape == (batch, encoder_struct[-1]), out.shape
    assert jnp.allclose(out, ref, atol=1e-4, rtol=1e-4), (
        float(jnp.max(jnp.abs(out - ref))))

    print("KERNEL_OK")
</pallas_src>

<mosaic_0001>
module attributes {stable_mosaic.version = 11 : i64} {
  func.func @kernel(%arg0: memref<8x32xf32, #tpu.memory_space<vmem>>, %arg1: memref<3x128x128xf32, #tpu.memory_space<vmem>>, %arg2: memref<3x3x128xf32, #tpu.memory_space<vmem>>, %arg3: memref<8x128xf32, #tpu.memory_space<vmem>>) attributes {dimension_semantics = [], scalar_prefetch = 0 : i64, scratch_operands = 0 : i64, tpu.core_type = #tpu.core_type<tc>} {
    %c0 = arith.constant 0 : index
    %c0_0 = arith.constant 0 : index
    %0 = vector.load %arg0[%c0, %c0_0] : memref<8x32xf32, #tpu.memory_space<vmem>>, vector<8x32xf32>
    %c0_1 = arith.constant 0 : index
    %c0_2 = arith.constant 0 : index
    %c0_3 = arith.constant 0 : index
    %1 = vector.load %arg1[%c0_1, %c0_2, %c0_3] : memref<3x128x128xf32, #tpu.memory_space<vmem>>, vector<1x32x128xf32>
    %2 = vector.shape_cast %1 : vector<1x32x128xf32> to vector<32x128xf32>
    %c0_4 = arith.constant 0 : index
    %c0_5 = arith.constant 0 : index
    %c0_6 = arith.constant 0 : index
    %3 = vector.load %arg2[%c0_4, %c0_5, %c0_6] : memref<3x3x128xf32, #tpu.memory_space<vmem>>, vector<1x3x128xf32>
    %4 = vector.shape_cast %3 : vector<1x3x128xf32> to vector<3x128xf32>
    %5 = vector.extract_strided_slice %4 {offsets = [0, 0], sizes = [1, 128], strides = [1, 1]} : vector<3x128xf32> to vector<1x128xf32>
    %cst = arith.constant dense<0.000000e+00> : vector<8x128xf32>
    %6 = tpu.matmul %0, %2, %cst {dimension_numbers = #tpu.dot_dimension_numbers<[1], [0], [0], [1], [0, 0, 1, 1], [], []>} : vector<8x32xf32>, vector<32x128xf32>, vector<8x128xf32> -> vector<8x128xf32>
    %7 = vector.broadcast %5 : vector<1x128xf32> to vector<8x128xf32>
    %8 = arith.addf %6, %7 : vector<8x128xf32>
    %9 = vector.extract_strided_slice %4 {offsets = [1, 0], sizes = [1, 128], strides = [1, 1]} : vector<3x128xf32> to vector<1x128xf32>
    %10 = vector.extract_strided_slice %4 {offsets = [2, 0], sizes = [1, 128], strides = [1, 1]} : vector<3x128xf32> to vector<1x128xf32>
    %cst_7 = arith.constant 0.000000e+00 : f32
    %11 = vector.broadcast %cst_7 : f32 to vector<8x128xf32>
    %12 = arith.maximumf %8, %11 : vector<8x128xf32>
    %cst_8 = arith.constant dense<0.000000e+00> : vector<128xf32>
    %13 = vector.multi_reduction <add>, %12, %cst_8 [0] : vector<8x128xf32> to vector<128xf32>
    %14 = vector.shape_cast %13 : vector<128xf32> to vector<1x128xf32>
    %cst_9 = arith.constant 1.250000e-01 : f32
    %15 = vector.broadcast %cst_9 : f32 to vector<1x128xf32>
    %16 = arith.mulf %14, %15 : vector<1x128xf32>
    %17 = arith.mulf %12, %12 : vector<8x128xf32>
    %cst_10 = arith.constant dense<0.000000e+00> : vector<128xf32>
    %18 = vector.multi_reduction <add>, %17, %cst_10 [0] : vector<8x128xf32> to vector<128xf32>
    %19 = vector.shape_cast %18 : vector<128xf32> to vector<1x128xf32>
    %cst_11 = arith.constant 1.250000e-01 : f32
    %20 = vector.broadcast %cst_11 : f32 to vector<1x128xf32>
    %21 = arith.mulf %19, %20 : vector<1x128xf32>
    %22 = arith.mulf %16, %16 : vector<1x128xf32>
    %23 = arith.subf %21, %22 : vector<1x128xf32>
    %cst_12 = arith.constant 0.000000e+00 : f32
    %24 = vector.broadcast %cst_12 : f32 to vector<1x128xf32>
    %25 = arith.maximumf %23, %24 : vector<1x128xf32>
    %cst_13 = arith.constant 9.99999974E-6 : f32
    %26 = vector.broadcast %cst_13 : f32 to vector<1x128xf32>
    %27 = arith.addf %25, %26 : vector<1x128xf32>
    %28 = math.rsqrt %27 : vector<1x128xf32>
    %29 = arith.mulf %9, %28 : vector<1x128xf32>
    %30 = arith.mulf %16, %29 : vector<1x128xf32>
    %31 = arith.subf %10, %30 : vector<1x128xf32>
    %32 = vector.broadcast %29 : vector<1x128xf32> to vector<8x128xf32>
    %33 = arith.mulf %12, %32 : vector<8x128xf32>
    %34 = vector.broadcast %31 : vector<1x128xf32> to vector<8x128xf32>
    %35 = arith.addf %33, %34 : vector<8x128xf32>
    %c1 = arith.constant 1 : index
    %c0_14 = arith.constant 0 : index
    %c0_15 = arith.constant 0 : index
    %36 = vector.load %arg1[%c1, %c0_14, %c0_15] : memref<3x128x128xf32, #tpu.memory_space<vmem>>, vector<1x128x128xf32>
    %37 = vector.shape_cast %36 : vector<1x128x128xf32> to vector<128x128xf32>
    %c1_16 = arith.constant 1 : index
    %c0_17 = arith.constant 0 : index
    %c0_18 = arith.constant 0 : index
    %38 = vector.load %arg2[%c1_16, %c0_17, %c0_18] : memref<3x3x128xf32, #tpu.memory_space<vmem>>, vector<1x3x128xf32>
    %39 = vector.shape_cast %38 : vector<1x3x128xf32> to vector<3x128xf32>
    %40 = vector.extract_strided_slice %39 {offsets = [0, 0], sizes = [1, 128], strides = [1, 1]} : vector<3x128xf32> to vector<1x128xf32>
    %cst_19 = arith.constant dense<0.000000e+00> : vector<8x128xf32>
    %41 = tpu.matmul %35, %37, %cst_19 {dimension_numbers = #tpu.dot_dimension_numbers<[1], [0], [0], [1], [0, 0, 1, 1], [], []>} : vector<8x128xf32>, vector<128x128xf32>, vector<8x128xf32> -> vector<8x128xf32>
    %42 = vector.broadcast %40 : vector<1x128xf32> to vector<8x128xf32>
    %43 = arith.addf %41, %42 : vector<8x128xf32>
    %44 = vector.extract_strided_slice %39 {offsets = [1, 0], sizes = [1, 128], strides = [1, 1]} : vector<3x128xf32> to vector<1x128xf32>
    %45 = vector.extract_strided_slice %39 {offsets = [2, 0], sizes = [1, 128], strides = [1, 1]} : vector<3x128xf32> to vector<1x128xf32>
    %cst_20 = arith.constant 0.000000e+00 : f32
    %46 = vector.broadcast %cst_20 : f32 to vector<8x128xf32>
    %47 = arith.maximumf %43, %46 : vector<8x128xf32>
    %cst_21 = arith.constant dense<0.000000e+00> : vector<128xf32>
    %48 = vector.multi_reduction <add>, %47, %cst_21 [0] : vector<8x128xf32> to vector<128xf32>
    %49 = vector.shape_cast %48 : vector<128xf32> to vector<1x128xf32>
    %cst_22 = arith.constant 1.250000e-01 : f32
    %50 = vector.broadcast %cst_22 : f32 to vector<1x128xf32>
    %51 = arith.mulf %49, %50 : vector<1x128xf32>
    %52 = arith.mulf %47, %47 : vector<8x128xf32>
    %cst_23 = arith.constant dense<0.000000e+00> : vector<128xf32>
    %53 = vector.multi_reduction <add>, %52, %cst_23 [0] : vector<8x128xf32> to vector<128xf32>
    %54 = vector.shape_cast %53 : vector<128xf32> to vector<1x128xf32>
    %cst_24 = arith.constant 1.250000e-01 : f32
    %55 = vector.broadcast %cst_24 : f32 to vector<1x128xf32>
    %56 = arith.mulf %54, %55 : vector<1x128xf32>
    %57 = arith.mulf %51, %51 : vector<1x128xf32>
    %58 = arith.subf %56, %57 : vector<1x128xf32>
    %cst_25 = arith.constant 0.000000e+00 : f32
    %59 = vector.broadcast %cst_25 : f32 to vector<1x128xf32>
    %60 = arith.maximumf %58, %59 : vector<1x128xf32>
    %cst_26 = arith.constant 9.99999974E-6 : f32
    %61 = vector.broadcast %cst_26 : f32 to vector<1x128xf32>
    %62 = arith.addf %60, %61 : vector<1x128xf32>
    %63 = math.rsqrt %62 : vector<1x128xf32>
    %64 = arith.mulf %44, %63 : vector<1x128xf32>
    %65 = arith.mulf %51, %64 : vector<1x128xf32>
    %66 = arith.subf %45, %65 : vector<1x128xf32>
    %67 = vector.broadcast %64 : vector<1x128xf32> to vector<8x128xf32>
    %68 = arith.mulf %47, %67 : vector<8x128xf32>
    %69 = vector.broadcast %66 : vector<1x128xf32> to vector<8x128xf32>
    %70 = arith.addf %68, %69 : vector<8x128xf32>
    %c2 = arith.constant 2 : index
    %c0_27 = arith.constant 0 : index
    %c0_28 = arith.constant 0 : index
    %71 = vector.load %arg1[%c2, %c0_27, %c0_28] : memref<3x128x128xf32, #tpu.memory_space<vmem>>, vector<1x128x128xf32>
    %72 = vector.shape_cast %71 : vector<1x128x128xf32> to vector<128x128xf32>
    %c2_29 = arith.constant 2 : index
    %c0_30 = arith.constant 0 : index
    %c0_31 = arith.constant 0 : index
    %73 = vector.load %arg2[%c2_29, %c0_30, %c0_31] : memref<3x3x128xf32, #tpu.memory_space<vmem>>, vector<1x3x128xf32>
    %74 = vector.shape_cast %73 : vector<1x3x128xf32> to vector<3x128xf32>
    %75 = vector.extract_strided_slice %74 {offsets = [0, 0], sizes = [1, 128], strides = [1, 1]} : vector<3x128xf32> to vector<1x128xf32>
    %cst_32 = arith.constant dense<0.000000e+00> : vector<8x128xf32>
    %76 = tpu.matmul %70, %72, %cst_32 {dimension_numbers = #tpu.dot_dimension_numbers<[1], [0], [0], [1], [0, 0, 1, 1], [], []>} : vector<8x128xf32>, vector<128x128xf32>, vector<8x128xf32> -> vector<8x128xf32>
    %77 = vector.broadcast %75 : vector<1x128xf32> to vector<8x128xf32>
    %78 = arith.addf %76, %77 : vector<8x128xf32>
    %c0_33 = arith.constant 0 : index
    %c0_34 = arith.constant 0 : index
    %79 = vector.load %arg3[%c0_33, %c0_34] : memref<8x128xf32, #tpu.memory_space<vmem>>, vector<8x128xf32>
    tpu.vector_store %arg3[%c0_33, %c0_34], %78 {strides = array<i32>} : memref<8x128xf32, #tpu.memory_space<vmem>>, vector<8x128xf32>,
    return
  }
}

</mosaic_0001>

<llo_original>
// kernel: wsc_1det_struct_forward.1
$region0: #{wsc_1det_struct_forward.1}
  #allocation0 [shape = 'u32[]', space=smem, size = 0x4, offset = 0x4, fixed_abs, tag = 'smem constant byte address 0x4 - core index']
  #allocation1 [shape = 'u32[144,128]{1,0:T(1,128)}', space=vmem, size = 0x12000, scoped, tag = 'internal scratch']
  %s0 = inlined_call_operand.hbm [shape: f32[8,32], index: 0, kind: input, shape index: {}]
  %s1 = inlined_call_operand.hbm [shape: f32[3,128,128], index: 1, kind: input, shape index: {}]
  %s2 = inlined_call_operand.hbm [shape: f32[3,3,128], index: 2, kind: input, shape index: {}]
  %s3 = inlined_call_operand.hbm [shape: f32[8,128], index: 3, kind: output, shape index: {}]
  %s4 = sld [smem:[#allocation0]]
  $region34: #{wsc_1det_struct_forward.1} parent=0
    _
  %s6 = ssub.s32 1, %s4
  %s7 = scalar_select 0, %s6, %s4
  $region1: #{wsc_1det_struct_forward.1} parent=0
    #allocation2 [shape = 'u8[4096]{0}', space=vmem, size = 0x1000, scoped, tag = 'input window, operand 0, single buffered']
    #allocation3 [shape = 's32[1]{0}', space=sflag, size = 0x4, scoped, tag = 'scoped memory for wsc_1det_struct_forward.1']
    #allocation4 [shape = 's32[1]{0}', space=sflag, size = 0x4, scoped, tag = 'scoped memory for wsc_1det_struct_forward.1']
    #allocation5 [shape = 'u8[196608]{0}', space=vmem, size = 0x30000, scoped, tag = 'input window, operand 1, single buffered']
    #allocation6 [shape = 's32[1]{0}', space=sflag, size = 0x4, scoped, tag = 'scoped memory for wsc_1det_struct_forward.1']
    #allocation7 [shape = 'u8[6144]{0}', space=vmem, size = 0x1800, scoped, tag = 'input window, operand 2, single buffered']
    #allocation8 [shape = 'u8[4096]{0}', space=vmem, size = 0x1000, scoped, tag = 'output window, operand 0, single buffered']
    %8 = vsyncpa [#allocation3], 0
    %9 = vsyncpa [#allocation6], 0
    %10 = vsyncpa [#allocation4], 0
    // Predicated region
    $region2: #{wsc_1det_struct_forward.1} parent=1 // pred_check
      _
    $region3: #{wsc_1det_struct_forward.1} parent=1 // pred_check_branch
      %12 = sbr.rel (0) target = $region5
    $region4: #{wsc_1det_struct_forward.1} parent=1 // pred_region
      %s14 = ssub.s32 128, 128
      %15 = vsyncadd [#allocation3], %s14
      %s17 = sshll.u32 [#allocation2], 4
      %s18 = int_to_ptr.vmem [resolvable:$true] %s17
      %20 = dma.hbm_to_vmem [thread:$0]  %s0, 128, %s18, [#allocation3]
    $region5: #{wsc_1det_struct_forward.1} parent=1 // pred_fallthru
      _
    // Predicated region
    $region6: #{wsc_1det_struct_forward.1} parent=1 // pred_check
      _
    $region7: #{wsc_1det_struct_forward.1} parent=1 // pred_check_branch
      %22 = sbr.rel (0) target = $region9
    $region8: #{wsc_1det_struct_forward.1} parent=1 // pred_region
      %s24 = ssub.s32 6144, 6144
      %25 = vsyncadd [#allocation6], %s24
      %s26 = sshll.u32 [#allocation5], 4
      %s27 = int_to_ptr.vmem [resolvable:$true] %s26
      %32 = dma.hbm_to_vmem [thread:$0]  %s1, 6144, %s27, [#allocation6], 128, 128, 8
    $region9: #{wsc_1det_struct_forward.1} parent=1 // pred_fallthru
      _
    // Predicated region
    $region10: #{wsc_1det_struct_forward.1} parent=1 // pred_check
      _
    $region11: #{wsc_1det_struct_forward.1} parent=1 // pred_check_branch
      %34 = sbr.rel (0) target = $region13
    $region12: #{wsc_1det_struct_forward.1} parent=1 // pred_region
      %s36 = ssub.s32 192, 192
      %37 = vsyncadd [#allocation6], %s36
      %s38 = sshll.u32 [#allocation7], 4
      %s39 = int_to_ptr.vmem [resolvable:$true] %s38
      %44 = dma.hbm_to_vmem [thread:$0]  %s2, 192, %s39, [#allocation6], 64, 64, 4
    $region13: #{wsc_1det_struct_forward.1} parent=1 // pred_fallthru
      _
    // Predicated region
    $region14: #{wsc_1det_struct_forward.1} parent=1 // pred_check
      _
    $region15: #{wsc_1det_struct_forward.1} parent=1 // pred_check_branch
      %46 = sbr.rel (0) target = $region17
    $region16: #{wsc_1det_struct_forward.1} parent=1 // pred_region
      %47 = dma.done [#allocation3], 128
    $region17: #{wsc_1det_struct_forward.1} parent=1 // pred_fallthru
      _
    // Predicated region
    $region18: #{wsc_1det_struct_forward.1} parent=1 // pred_check
      _
    $region19: #{wsc_1det_struct_forward.1} parent=1 // pred_check_branch
      %49 = sbr.rel (0) target = $region21
    $region20: #{wsc_1det_struct_forward.1} parent=1 // pred_region
      %50 = dma.done [#allocation6], 6144
    $region21: #{wsc_1det_struct_forward.1} parent=1 // pred_fallthru
      _
    // Predicated region
    $region22: #{wsc_1det_struct_forward.1} parent=1 // pred_check
      _
    $region23: #{wsc_1det_struct_forward.1} parent=1 // pred_check_branch
      %52 = sbr.rel (0) target = $region25
    $region24: #{wsc_1det_struct_forward.1} parent=1 // pred_region
      %53 = dma.done [#allocation6], 192
    $region25: #{wsc_1det_struct_forward.1} parent=1 // pred_fallthru
      _
    %v54 = vld [vmem:[#allocation2] sm:$0xff]
    %v55 = vld [vmem:[#allocation5] sm:$0xff]
    %v56 = vld [vmem:[#allocation5 + $0x8] sm:$0xff]
    %v57 = vld [vmem:[#allocation5 + $0x10] sm:$0xff]
    %v58 = vld [vmem:[#allocation5 + $0x18] sm:$0xff]
    %v59 = vld [vmem:[#allocation7] sm:$0x7]
    %v60 = vlaneseq
    %v61 = vshrl.u32 %v60, 7
    %v62 = vsub.s32 0, %v61
    %v63 = vrot.slane %v59, %v62
    %vm64 = vcmask 261120
    %v66 = vsel %vm64, %v54, 0
    %68 = vmatprep.subr.mxu0 0.0
    %69 = vmatpush1.msra.mxu0 %v55
    %70 = vmatprep.subr.mxu0 0.0
    %71 = vmatpush1.msra.mxu0 %v56
    %72 = vmatprep.subr.mxu0 0.0
    %73 = vmatpush1.msra.mxu0 %v57
    %74 = vmatprep.subr.mxu0 0.0
    %75 = vmatpush1.msra.mxu0 %v58
    %76 = vmatprep.subr.mxu0 0.0
    %77 = vmatpush1.msra.mxu0 0.0
    %78 = vmatprep.subr.mxu0 0.0
    %79 = vmatpush1.msra.mxu0 0.0
    %80 = vmatprep.subr.mxu0 0.0
    %81 = vmatpush1.msra.mxu0 0.0
    %82 = vmatprep.subr.mxu0 0.0
    %83 = vmatpush1.msra.mxu0 0.0
    %84 = vmatprep.subr.mxu0 0.0
    %85 = vmatpush1.msra.mxu0 0.0
    %86 = vmatprep.subr.mxu0 0.0
    %87 = vmatpush1.msra.mxu0 0.0
    %88 = vmatprep.subr.mxu0 0.0
    %89 = vmatpush1.msra.mxu0 0.0
    %90 = vmatprep.subr.mxu0 0.0
    %91 = vmatpush1.msra.mxu0 0.0
    %92 = vmatprep.subr.mxu0 0.0
    %93 = vmatpush1.msra.mxu0 0.0
    %94 = vmatprep.subr.mxu0 0.0
    %95 = vmatpush1.msra.mxu0 0.0
    %96 = vmatprep.subr.mxu0 0.0
    %97 = vmatpush1.msra.mxu0 0.0
    %98 = vmatprep.subr.mxu0 0.0
    %99 = vmatpush1.msra.mxu0 0.0
    %100 = vmatprep.subr.mxu0 0.0
    %101 = vmatpush1.msra.mxu0 0.0
    %102 = vmatprep.subr.mxu0 0.0
    %103 = vmatpush1.msra.mxu0 0.0
    %104 = vmatprep.subr.mxu0 0.0
    %105 = vmatpush1.msra.mxu0 0.0
    %106 = vmatprep.subr.mxu0 0.0
    %107 = vmatpush1.msra.mxu0 0.0
    %108 = vmatprep.subr.mxu0 0.0
    %109 = vmatpush1.msra.mxu0 0.0
    %110 = vmatprep.subr.mxu0 0.0
    %111 = vmatpush1.msra.mxu0 0.0
    %112 = vmatprep.subr.mxu0 0.0
    %113 = vmatpush1.msra.mxu0 0.0
    %114 = vmatprep.subr.mxu0 0.0
    %115 = vmatpush1.msra.mxu0 0.0
    %116 = vmatprep.subr.mxu0 0.0
    %117 = vmatpush1.msra.mxu0 0.0
    %118 = vmatprep.subr.mxu0 0.0
    %119 = vmatpush1.msra.mxu0 0.0
    %120 = vmatprep.subr.mxu0 0.0
    %121 = vmatpush1.msra.mxu0 0.0
    %122 = vmatprep.subr.mxu0 0.0
    %123 = vmatpush1.msra.mxu0 0.0
    %124 = vmatprep.subr.mxu0 0.0
    %125 = vmatpush1.msra.mxu0 0.0
    %126 = vmatprep.subr.mxu0 0.0
    %127 = vmatpush1.msra.mxu0 0.0
    %128 = vmatprep.subr.mxu0 0.0
    %129 = vmatpush1.msra.mxu0 0.0
    %130 = vmatprep.subr.mxu0 0.0
    %131 = vmatpush1.msra.mxu0 0.0
    %132 = vmatprep.mubr.f32.mxu0 0.0
    %133 = vmatmul.mubr.f32.gmra.mrb[0].mxu0 %v66
    %v134 = vpop.f32.mrb[0].mxu0
    %v135 = vadd.f32 %v63, %v134
    %v136 = vpop.f32.mrb[0].mxu0
    %137 = vdwg.mxu0
    %v138 = vmax.f32 %v135, 0.0
    %v139 = vrot.slane %v138, 4
    %v140 = vadd.f32 %v138, %v139
    %v141 = vrot.slane %v140, 2
    %v142 = vadd.f32 %v140, %v141
    %v143 = vrot.slane %v142, 1
    %v144 = vadd.f32 %v142, %v143
    %v145 = vmul.f32 %v144, 0.125
    %v146 = vmul.f32 %v138, %v138
    %v147 = vrot.slane %v146, 4
    %v148 = vadd.f32 %v146, %v147
    %v149 = vrot.slane %v148, 2
    %v150 = vadd.f32 %v148, %v149
    %v151 = vrot.slane %v150, 1
    %v152 = vadd.f32 %v150, %v151
    %v153 = vmul.f32 %v152, 0.125
    %v154 = vmul.f32 %v145, %v145
    %v155 = vsub.f32 %v153, %v154
    %v156 = vmax.f32 %v155, 0.0
    %v157 = vadd.f32 %v156, 1e-05
    %v158 = vrsqrt.pop %v157
    %v159 = vmul.f32 %v59, %v158
    %v160 = vmul.f32 %v145, %v159
    %v162 = vrot.slane %v160, 7
    %v164 = vsub.f32 %v59, %v162
    %v165 = vlaneseq
    %v166 = vshrl.u32 %v165, 7
    %v167 = vsub.s32 1, %v166
    %v168 = vrot.slane %v159, %v167
    %v169 = vmul.f32 %v138, %v168
    %v170 = vlaneseq
    %v171 = vshrl.u32 %v170, 7
    %v172 = vsub.s32 2, %v171
    %v173 = vrot.slane %v164, %v172
    %v174 = vadd.f32 %v169, %v173
    %s175 = scalar_lea.vmem [#allocation5], 128
    %v176 = vld [vmem:[%s175] sm:$0xff]
    %v177 = vld [vmem:[%s175 + $0x8] sm:$0xff]
    %v178 = vld [vmem:[%s175 + $0x10] sm:$0xff]
    %v179 = vld [vmem:[%s175 + $0x18] sm:$0xff]
    %v180 = vld [vmem:[%s175 + $0x20] sm:$0xff]
    %v181 = vld [vmem:[%s175 + $0x28] sm:$0xff]
    %v182 = vld [vmem:[%s175 + $0x30] sm:$0xff]
    %v183 = vld [vmem:[%s175 + $0x38] sm:$0xff]
    %v184 = vld [vmem:[%s175 + $0x40] sm:$0xff]
    %v185 = vld [vmem:[%s175 + $0x48] sm:$0xff]
    %v186 = vld [vmem:[%s175 + $0x50] sm:$0xff]
    %v187 = vld [vmem:[%s175 + $0x58] sm:$0xff]
    %v188 = vld [vmem:[%s175 + $0x60] sm:$0xff]
    %v189 = vld [vmem:[%s175 + $0x68] sm:$0xff]
    %v190 = vld [vmem:[%s175 + $0x70] sm:$0xff]
    %v191 = vld [vmem:[%s175 + $0x78] sm:$0xff]
    %s192 = scalar_lea.vmem [#allocation7], 4
    %v193 = vld [vmem:[%s192] sm:$0x7]
    %v194 = vlaneseq
    %v195 = vshrl.u32 %v194, 7
    %v196 = vsub.s32 0, %v195
    %v197 = vrot.slane %v193, %v196
    %198 = vmatprep.subr.mxu0 0.0
    %199 = vmatpush1.msra.mxu0 %v176
    %200 = vmatprep.subr.mxu0 0.0
    %201 = vmatpush1.msra.mxu0 %v177
    %202 = vmatprep.subr.mxu0 0.0
    %203 = vmatpush1.msra.mxu0 %v178
    %204 = vmatprep.subr.mxu0 0.0
    %205 = vmatpush1.msra.mxu0 %v179
    %206 = vmatprep.subr.mxu0 0.0
    %207 = vmatpush1.msra.mxu0 %v180
    %208 = vmatprep.subr.mxu0 0.0
    %209 = vmatpush1.msra.mxu0 %v181
    %210 = vmatprep.subr.mxu0 0.0
    %211 = vmatpush1.msra.mxu0 %v182
    %212 = vmatprep.subr.mxu0 0.0
    %213 = vmatpush1.msra.mxu0 %v183
    %214 = vmatprep.subr.mxu0 0.0
    %215 = vmatpush1.msra.mxu0 %v184
    %216 = vmatprep.subr.mxu0 0.0
    %217 = vmatpush1.msra.mxu0 %v185
    %218 = vmatprep.subr.mxu0 0.0
    %219 = vmatpush1.msra.mxu0 %v186
    %220 = vmatprep.subr.mxu0 0.0
    %221 = vmatpush1.msra.mxu0 %v187
    %222 = vmatprep.subr.mxu0 0.0
    %223 = vmatpush1.msra.mxu0 %v188
    %224 = vmatprep.subr.mxu0 0.0
    %225 = vmatpush1.msra.mxu0 %v189
    %226 = vmatprep.subr.mxu0 0.0
    %227 = vmatpush1.msra.mxu0 %v190
    %228 = vmatprep.subr.mxu0 0.0
    %229 = vmatpush1.msra.mxu0 %v191
    %230 = vmatprep.subr.mxu0 0.0
    %231 = vmatpush1.msra.mxu0 0.0
    %232 = vmatprep.subr.mxu0 0.0
    %233 = vmatpush1.msra.mxu0 0.0
    %234 = vmatprep.subr.mxu0 0.0
    %235 = vmatpush1.msra.mxu0 0.0
    %236 = vmatprep.subr.mxu0 0.0
    %237 = vmatpush1.msra.mxu0 0.0
    %238 = vmatprep.subr.mxu0 0.0
    %239 = vmatpush1.msra.mxu0 0.0
    %240 = vmatprep.subr.mxu0 0.0
    %241 = vmatpush1.msra.mxu0 0.0
    %242 = vmatprep.subr.mxu0 0.0
    %243 = vmatpush1.msra.mxu0 0.0
    %244 = vmatprep.subr.mxu0 0.0
    %245 = vmatpush1.msra.mxu0 0.0
    %246 = vmatprep.subr.mxu0 0.0
    %247 = vmatpush1.msra.mxu0 0.0
    %248 = vmatprep.subr.mxu0 0.0
    %249 = vmatpush1.msra.mxu0 0.0
    %250 = vmatprep.subr.mxu0 0.0
    %251 = vmatpush1.msra.mxu0 0.0
    %252 = vmatprep.subr.mxu0 0.0
    %253 = vmatpush1.msra.mxu0 0.0
    %254 = vmatprep.subr.mxu0 0.0
    %255 = vmatpush1.msra.mxu0 0.0
    %256 = vmatprep.subr.mxu0 0.0
    %257 = vmatpush1.msra.mxu0 0.0
    %258 = vmatprep.subr.mxu0 0.0
    %259 = vmatpush1.msra.mxu0 0.0
    %260 = vmatprep.subr.mxu0 0.0
    %261 = vmatpush1.msra.mxu0 0.0
    %262 = vmatprep.mubr.f32.mxu0 0.0
    %263 = vmatmul.mubr.f32.gmra.mrb[0].mxu0 %v174
    %v264 = vpop.f32.mrb[0].mxu0
    %v265 = vadd.f32 %v197, %v264
    %v266 = vpop.f32.mrb[0].mxu0
    %267 = vdwg.mxu0
    %v268 = vmax.f32 %v265, 0.0
    %v269 = vrot.slane %v268, 4
    %v270 = vadd.f32 %v268, %v269
    %v271 = vrot.slane %v270, 2
    %v272 = vadd.f32 %v270, %v271
    %v273 = vrot.slane %v272, 1
    %v274 = vadd.f32 %v272, %v273
    %v275 = vmul.f32 %v274, 0.125
    %v276 = vmul.f32 %v268, %v268
    %v277 = vrot.slane %v276, 4
    %v278 = vadd.f32 %v276, %v277
    %v279 = vrot.slane %v278, 2
    %v280 = vadd.f32 %v278, %v279
    %v281 = vrot.slane %v280, 1
    %v282 = vadd.f32 %v280, %v281
    %v283 = vmul.f32 %v282, 0.125
    %v284 = vmul.f32 %v275, %v275
    %v285 = vsub.f32 %v283, %v284
    %v286 = vmax.f32 %v285, 0.0
    %v287 = vadd.f32 %v286, 1e-05
    %v288 = vrsqrt.pop %v287
    %v289 = vmul.f32 %v193, %v288
    %v290 = vmul.f32 %v275, %v289
    %v292 = vrot.slane %v290, 7
    %v294 = vsub.f32 %v193, %v292
    %v295 = vlaneseq
    %v296 = vshrl.u32 %v295, 7
    %v297 = vsub.s32 1, %v296
    %v298 = vrot.slane %v289, %v297
    %v299 = vmul.f32 %v268, %v298
    %v300 = vlaneseq
    %v301 = vshrl.u32 %v300, 7
    %v302 = vsub.s32 2, %v301
    %v303 = vrot.slane %v294, %v302
    %v304 = vadd.f32 %v299, %v303
    %s305 = scalar_lea.vmem [#allocation5], 256
    %v306 = vld [vmem:[%s305] sm:$0xff]
    %v307 = vld [vmem:[%s305 + $0x8] sm:$0xff]
    %v308 = vld [vmem:[%s305 + $0x10] sm:$0xff]
    %v309 = vld [vmem:[%s305 + $0x18] sm:$0xff]
    %v310 = vld [vmem:[%s305 + $0x20] sm:$0xff]
    %v311 = vld [vmem:[%s305 + $0x28] sm:$0xff]
    %v312 = vld [vmem:[%s305 + $0x30] sm:$0xff]
    %v313 = vld [vmem:[%s305 + $0x38] sm:$0xff]
    %v314 = vld [vmem:[%s305 + $0x40] sm:$0xff]
    %v315 = vld [vmem:[%s305 + $0x48] sm:$0xff]
    %v316 = vld [vmem:[%s305 + $0x50] sm:$0xff]
    %v317 = vld [vmem:[%s305 + $0x58] sm:$0xff]
    %v318 = vld [vmem:[%s305 + $0x60] sm:$0xff]
    %v319 = vld [vmem:[%s305 + $0x68] sm:$0xff]
    %v320 = vld [vmem:[%s305 + $0x70] sm:$0xff]
    %v321 = vld [vmem:[%s305 + $0x78] sm:$0xff]
    %s322 = scalar_lea.vmem [#allocation7], 8
    %v323 = vld [vmem:[%s322] sm:$0x7]
    %v324 = vlaneseq
    %v325 = vshrl.u32 %v324, 7
    %v326 = vsub.s32 0, %v325
    %v327 = vrot.slane %v323, %v326
    %328 = vmatprep.subr.mxu0 0.0
    %329 = vmatpush1.msra.mxu0 %v306
    %330 = vmatprep.subr.mxu0 0.0
    %331 = vmatpush1.msra.mxu0 %v307
    %332 = vmatprep.subr.mxu0 0.0
    %333 = vmatpush1.msra.mxu0 %v308
    %334 = vmatprep.subr.mxu0 0.0
    %335 = vmatpush1.msra.mxu0 %v309
    %336 = vmatprep.subr.mxu0 0.0
    %337 = vmatpush1.msra.mxu0 %v310
    %338 = vmatprep.subr.mxu0 0.0
    %339 = vmatpush1.msra.mxu0 %v311
    %340 = vmatprep.subr.mxu0 0.0
    %341 = vmatpush1.msra.mxu0 %v312
    %342 = vmatprep.subr.mxu0 0.0
    %343 = vmatpush1.msra.mxu0 %v313
    %344 = vmatprep.subr.mxu0 0.0
    %345 = vmatpush1.msra.mxu0 %v314
    %346 = vmatprep.subr.mxu0 0.0
    %347 = vmatpush1.msra.mxu0 %v315
    %348 = vmatprep.subr.mxu0 0.0
    %349 = vmatpush1.msra.mxu0 %v316
    %350 = vmatprep.subr.mxu0 0.0
    %351 = vmatpush1.msra.mxu0 %v317
    %352 = vmatprep.subr.mxu0 0.0
    %353 = vmatpush1.msra.mxu0 %v318
    %354 = vmatprep.subr.mxu0 0.0
    %355 = vmatpush1.msra.mxu0 %v319
    %356 = vmatprep.subr.mxu0 0.0
    %357 = vmatpush1.msra.mxu0 %v320
    %358 = vmatprep.subr.mxu0 0.0
    %359 = vmatpush1.msra.mxu0 %v321
    %360 = vmatprep.subr.mxu0 0.0
    %361 = vmatpush1.msra.mxu0 0.0
    %362 = vmatprep.subr.mxu0 0.0
    %363 = vmatpush1.msra.mxu0 0.0
    %364 = vmatprep.subr.mxu0 0.0
    %365 = vmatpush1.msra.mxu0 0.0
    %366 = vmatprep.subr.mxu0 0.0
    %367 = vmatpush1.msra.mxu0 0.0
    %368 = vmatprep.subr.mxu0 0.0
    %369 = vmatpush1.msra.mxu0 0.0
    %370 = vmatprep.subr.mxu0 0.0
    %371 = vmatpush1.msra.mxu0 0.0
    %372 = vmatprep.subr.mxu0 0.0
    %373 = vmatpush1.msra.mxu0 0.0
    %374 = vmatprep.subr.mxu0 0.0
    %375 = vmatpush1.msra.mxu0 0.0
    %376 = vmatprep.subr.mxu0 0.0
    %377 = vmatpush1.msra.mxu0 0.0
    %378 = vmatprep.subr.mxu0 0.0
    %379 = vmatpush1.msra.mxu0 0.0
    %380 = vmatprep.subr.mxu0 0.0
    %381 = vmatpush1.msra.mxu0 0.0
    %382 = vmatprep.subr.mxu0 0.0
    %383 = vmatpush1.msra.mxu0 0.0
    %384 = vmatprep.subr.mxu0 0.0
    %385 = vmatpush1.msra.mxu0 0.0
    %386 = vmatprep.subr.mxu0 0.0
    %387 = vmatpush1.msra.mxu0 0.0
    %388 = vmatprep.subr.mxu0 0.0
    %389 = vmatpush1.msra.mxu0 0.0
    %390 = vmatprep.subr.mxu0 0.0
    %391 = vmatpush1.msra.mxu0 0.0
    %392 = vmatprep.mubr.f32.mxu0 0.0
    %393 = vmatmul.mubr.f32.gmra.mrb[0].mxu0 %v304
    %v394 = vpop.f32.mrb[0].mxu0
    %v395 = vadd.f32 %v327, %v394
    %v396 = vpop.f32.mrb[0].mxu0
    %397 = vdwg.mxu0
    %398 = vst [vmem:[#allocation8] sm:$0xff] %v395
    // Predicated region
    $region26: #{wsc_1det_struct_forward.1} parent=1 // pred_check
      _
    $region27: #{wsc_1det_struct_forward.1} parent=1 // pred_check_branch
      %400 = sbr.rel (0) target = $region29
    $region28: #{wsc_1det_struct_forward.1} parent=1 // pred_region
      %s402 = ssub.s32 128, 128
      %403 = vsyncadd [#allocation4], %s402
      %s405 = sshll.u32 [#allocation8], 4
      %s406 = int_to_ptr.vmem [resolvable:$true] %s405
      %408 = dma.vmem_to_hbm [thread:$0]  %s406, 128, %s3, [#allocation4]
    $region29: #{wsc_1det_struct_forward.1} parent=1 // pred_fallthru
      _
    // Predicated region
    $region30: #{wsc_1det_struct_forward.1} parent=1 // pred_check
      _
    $region31: #{wsc_1det_struct_forward.1} parent=1 // pred_check_branch
      %410 = sbr.rel (0) target = $region33
    $region32: #{wsc_1det_struct_forward.1} parent=1 // pred_region
      %411 = dma.done [#allocation4], 128
    $region33: #{wsc_1det_struct_forward.1} parent=1 // pred_fallthru
      _
    %412 = vsyncpa [#allocation3], 1
    %413 = vsyncpa [#allocation6], 1
    %414 = vsyncpa [#allocation4], 1

</llo_original>
